<compile_context>
chip_gen: v7x
topology: tpu7x:2x2x1
jax: 0.10.0
libtpu: 0.0.40
codegen_flags: <defaults>
</compile_context>

<pallas_src>
import functools
import math

import jax
import jax.numpy as jnp
import numpy as np
from jax.experimental import pallas as pl
from jax.experimental.pallas import tpu as pltpu

_LANES = 128


def _round_up(a, b):
    return ((a + b - 1) // b) * b


def _cdiv(a, b):
    return (a + b - 1) // b


def _mlp_kernel(x_ref, w1_ref, b1_ref, w2_ref, b2_ref, o_ref, acc_ref, *,
                approximate_gelu: bool):
    # x_ref:  (tm, Cin)      original dtype (cast to MXU dtype in-kernel)
    # w1_ref: (Cin, th)      compute dtype (bf16)
    # b1_ref: (1, th)        f32
    # w2_ref: (th, Cout_p)   compute dtype (bf16)
    # b2_ref: (1, Cout_p)    f32
    # o_ref:  (tm, Cout_p)   output dtype
    # acc_ref:(tm, Cout_p)   f32 accumulator, resident across the hidden axis
    j = pl.program_id(1)

    @pl.when(j == 0)
    def _():
        acc_ref[...] = jnp.zeros_like(acc_ref)

    x = x_ref[...].astype(w1_ref.dtype)
    h = jnp.dot(x, w1_ref[...], preferred_element_type=jnp.float32)
    h = h + b1_ref[...]
    if approximate_gelu:
        # tanh GELU -> EUP slot (cheaper on v6e/v7x); not bit-identical to
        # torch.nn.GELU()'s default exact form, so opt-in only.
        h = jax.nn.gelu(h, approximate=True)
    else:
        # Exact GELU (erf form), computed in f32, matching torch.nn.GELU().
        h = 0.5 * h * (1.0 + jax.lax.erf(h * (1.0 / math.sqrt(2.0))))
    # Fold the downcast into the GELU epilogue (no separate astype pass).
    h = h.astype(w2_ref.dtype)
    acc_ref[...] += jnp.dot(h, w2_ref[...], preferred_element_type=jnp.float32)

    @pl.when(j == pl.num_programs(1) - 1)
    def _():
        o_ref[...] = (acc_ref[...] + b2_ref[...]).astype(o_ref.dtype)


def mlp_pallas(x, w1, b1, w2, b2, *, tm=512, th=512,
               compute_dtype=jnp.bfloat16, out_dtype=None,
               approximate_gelu=False):
    """x: (B, N, Cin); w1: (Cin, H); b1: (H,); w2: (H, Cout); b2: (Cout,).

    Weights are stored (in, out), i.e. already transposed vs. torch's Linear.
    """
    B, N, Cin = x.shape
    H = w1.shape[1]
    Cout = w2.shape[1]
    out_dtype = x.dtype if out_dtype is None else jnp.dtype(out_dtype)
    M = B * N

    # Row tile: large enough to amortize per-grid-step overhead, but clamped so
    # the "parallel" M axis has >= 2 steps (both v7x TensorCores get work).
    if M <= 8:
        tm_eff = 8
    else:
        tm_eff = min(tm, _round_up(_cdiv(M, 2), 8))
    M_pad = _round_up(M, tm_eff)

    # Lane-dense output: pad fc2 output columns to a multiple of 128 so the
    # output store is an unmasked 128-lane-wide vst (padding sliced off below).
    Cout_p = _round_up(Cout, _LANES)

    # Hidden (reduction) tiling: stream weight slabs over an "arbitrary" grid
    # axis instead of keeping full weights resident in VMEM. th is a multiple
    # of 256 (MXU-native width on v6e/v7x) whenever we actually stream.
    if _round_up(H, _LANES) <= th:
        th_eff, H_pad = H, H          # single reduction step, no H padding
    else:
        th_eff = th
        H_pad = _round_up(H, th_eff)

    x2d = x.reshape(M, Cin)
    if M_pad != M:
        x2d = jnp.pad(x2d, ((0, M_pad - M), (0, 0)))
    # NOTE: x keeps its original dtype; the bf16 cast happens in-kernel.

    w1c = w1.astype(compute_dtype)
    w2c = w2.astype(compute_dtype)
    b1p = b1.astype(jnp.float32)
    b2p = b2.astype(jnp.float32)
    if H_pad != H:
        w1c = jnp.pad(w1c, ((0, 0), (0, H_pad - H)))
        b1p = jnp.pad(b1p, (0, H_pad - H))
    if H_pad != H or Cout_p != Cout:
        w2c = jnp.pad(w2c, ((0, H_pad - H), (0, Cout_p - Cout)))
    if Cout_p != Cout:
        b2p = jnp.pad(b2p, (0, Cout_p - Cout))
    b1_2d = b1p.reshape(1, H_pad)
    b2_2d = b2p.reshape(1, Cout_p)

    grid = (M_pad // tm_eff, H_pad // th_eff)

    # Explicit VMEM budget: double-buffered tiles + accumulator scratch + the
    # fused f32/bf16 intermediates, plus compiler-scratch headroom. Capped
    # generation-aware (3/4 of physical VMEM: ~48 MiB v7x, ~96 MiB v5e/v6e).
    cbytes = np.dtype(compute_dtype).itemsize
    xbytes = np.dtype(x.dtype).itemsize
    obytes = np.dtype(out_dtype).itemsize
    tile_io = 2 * (tm_eff * Cin * xbytes                      # x tile
                   + Cin * th_eff * cbytes + th_eff * 4       # w1, b1 tiles
                   + th_eff * Cout_p * cbytes + Cout_p * 4    # w2, b2 tiles
                   + tm_eff * Cout_p * obytes)                # out tile
    scratch_bytes = tm_eff * Cout_p * 4                       # f32 accumulator
    interm = (tm_eff * Cin * cbytes                           # in-kernel x cast
              + tm_eff * th_eff * 4                           # f32 fc1 / GELU
              + tm_eff * th_eff * cbytes                      # bf16 GELU out
              + tm_eff * Cout_p * 4)                          # f32 fc2 partial
    needed = tile_io + scratch_bytes + interm + (4 << 20)
    try:
        vmem_cap = int(getattr(pltpu.get_tpu_info(), "vmem_capacity_bytes",
                               64 << 20))
    except Exception:
        vmem_cap = 64 << 20   # conservative fallback (v7x per-core VMEM)
    vmem_limit = int(min(max(needed, 16 << 20), (vmem_cap * 3) // 4))

    # TODO(synk): constant-index b2 spec (and streamed w1/w2 on v7x) could use
    # pipeline_mode=pl.Buffered(1)/Buffered(3) to trim/deepen buffering.
    kernel = functools.partial(_mlp_kernel, approximate_gelu=approximate_gelu)
    out2d = pl.pallas_call(
        kernel,
        out_shape=jax.ShapeDtypeStruct((M_pad, Cout_p), out_dtype),
        grid_spec=pltpu.PrefetchScalarGridSpec(
            num_scalar_prefetch=0,
            grid=grid,
            in_specs=[
                pl.BlockSpec((tm_eff, Cin), lambda i, j: (i, 0)),
                pl.BlockSpec((Cin, th_eff), lambda i, j: (0, j)),
                pl.BlockSpec((1, th_eff), lambda i, j: (0, j)),
                pl.BlockSpec((th_eff, Cout_p), lambda i, j: (j, 0)),
                pl.BlockSpec((1, Cout_p), lambda i, j: (0, 0)),
            ],
            out_specs=pl.BlockSpec((tm_eff, Cout_p), lambda i, j: (i, 0)),
            scratch_shapes=[pltpu.VMEM((tm_eff, Cout_p), jnp.float32)],
        ),
        compiler_params=pltpu.CompilerParams(
            dimension_semantics=("parallel", "arbitrary"),
            vmem_limit_bytes=vmem_limit,
        ),
    )(x2d, w1c, b1_2d, w2c, b2_2d)

    # Only slice dimensions that were actually padded (avoids an extra HBM
    # copy in the common aligned transformer case).
    if M_pad != M:
        out2d = out2d[:M]
    if Cout_p != Cout:
        out2d = out2d[:, :Cout]
    return out2d.reshape(B, N, Cout)


def mlp_reference(x, w1, b1, w2, b2):
    h = jnp.einsum("bnc,ch->bnh", x, w1) + b1
    h = 0.5 * h * (1.0 + jax.lax.erf(h / jnp.sqrt(2.0)))
    return jnp.einsum("bnh,ho->bno", h, w2) + b2


if __name__ == "__main__":
    # Small shapes consistent with the module: in_features=32, hidden=64.
    B, N, Cin = 2, 8, 32
    H = 64          # hidden_features
    Cout = Cin      # out_features defaults to in_features

    key = jax.random.PRNGKey(0)
    kx, k1, k2, k3, k4 = jax.random.split(key, 5)

    x = jax.random.normal(kx, (B, N, Cin), dtype=jnp.float32)
    # Parameters per nn.Linear, stored transposed: PyTorch computes x @ W.T,
    # we store W.T directly as (in, out).
    w1 = jax.random.normal(k1, (Cin, H), dtype=jnp.float32) * 0.02
    b1 = jax.random.normal(k2, (H,), dtype=jnp.float32) * 0.02
    w2 = jax.random.normal(k3, (H, Cout), dtype=jnp.float32) * 0.02
    b2 = jax.random.normal(k4, (Cout,), dtype=jnp.float32) * 0.02

    out = mlp_pallas(x, w1, b1, w2, b2)
    out = jax.block_until_ready(out)

    ref = mlp_reference(x, w1, b1, w2, b2)
    assert out.shape == (B, N, Cout)
    # bf16 matmul operands (f32 accumulation) -> relaxed tolerance vs f32 ref.
    assert jnp.allclose(out, ref, atol=5e-3, rtol=5e-2), "mismatch vs reference"

    print("KERNEL_OK")
</pallas_src>

<mosaic_0001>
module attributes {stable_mosaic.version = 11 : i64} {
  func.func @_mlp_kernel(%arg0: i32, %arg1: i32, %arg2: memref<8x32xf32, #tpu.memory_space<vmem>>, %arg3: memref<32x64xbf16, #tpu.memory_space<vmem>>, %arg4: memref<1x64xf32, #tpu.memory_space<vmem>>, %arg5: memref<64x128xbf16, #tpu.memory_space<vmem>>, %arg6: memref<1x128xf32, #tpu.memory_space<vmem>>, %arg7: memref<8x128xf32, #tpu.memory_space<vmem>>, %arg8: memref<8x128xf32, #tpu.memory_space<vmem>>) attributes {dimension_semantics = [#tpu.dimension_semantics<parallel>, #tpu.dimension_semantics<arbitrary>], iteration_bounds = array<i64: 2, 1>, scalar_prefetch = 0 : i64, scratch_operands = 1 : i64, tpu.core_type = #tpu.core_type<tc>, window_params = [{transform_indices = @transform_0, window_bounds = array<i64: 8, 32>}, {transform_indices = @transform_1, window_bounds = array<i64: 32, 64>}, {transform_indices = @transform_2, window_bounds = array<i64: 1, 64>}, {transform_indices = @transform_3, window_bounds = array<i64: 64, 128>}, {pipeline_mode = #tpu.pipeline_mode<synchronous>, transform_indices = @transform_4, window_bounds = array<i64: 1, 128>}, {transform_indices = @transform_5, window_bounds = array<i64: 8, 128>}]} {
    %c0_i32 = arith.constant 0 : i32
    %0 = arith.cmpi eq, %arg1, %c0_i32 : i32
    %1 = arith.extui %0 : i1 to i32
    %c0_i32_0 = arith.constant 0 : i32
    %2 = arith.cmpi ne, %1, %c0_i32_0 : i32
    scf.if %2 {
      %cst_18 = arith.constant 0.000000e+00 : f32
      %27 = vector.broadcast %cst_18 : f32 to vector<8x128xf32>
      %c0_19 = arith.constant 0 : index
      %c0_20 = arith.constant 0 : index
      %28 = vector.load %arg8[%c0_19, %c0_20] : memref<8x128xf32, #tpu.memory_space<vmem>>, vector<8x128xf32>
      tpu.vector_store %arg8[%c0_19, %c0_20], %27 {strides = array<i32>} : memref<8x128xf32, #tpu.memory_space<vmem>>, vector<8x128xf32>,
    } else {
    }
    %c0 = arith.constant 0 : index
    %c0_1 = arith.constant 0 : index
    %3 = vector.load %arg2[%c0, %c0_1] : memref<8x32xf32, #tpu.memory_space<vmem>>, vector<8x32xf32>
    %4 = arith.truncf %3 : vector<8x32xf32> to vector<8x32xbf16>
    %c0_2 = arith.constant 0 : index
    %c0_3 = arith.constant 0 : index
    %5 = vector.load %arg3[%c0_2, %c0_3] : memref<32x64xbf16, #tpu.memory_space<vmem>>, vector<32x64xbf16>
    %cst = arith.constant dense<0.000000e+00> : vector<8x64xf32>
    %6 = tpu.matmul %4, %5, %cst {dimension_numbers = #tpu.dot_dimension_numbers<[1], [0], [0], [1], [0, 0, 1, 1], [], []>} : vector<8x32xbf16>, vector<32x64xbf16>, vector<8x64xf32> -> vector<8x64xf32>
    %c0_4 = arith.constant 0 : index
    %c0_5 = arith.constant 0 : index
    %7 = vector.load %arg4[%c0_4, %c0_5] : memref<1x64xf32, #tpu.memory_space<vmem>>, vector<1x64xf32>
    %8 = vector.broadcast %7 : vector<1x64xf32> to vector<8x64xf32>
    %9 = arith.addf %6, %8 : vector<8x64xf32>
    %cst_6 = arith.constant 5.000000e-01 : f32
    %10 = vector.broadcast %cst_6 : f32 to vector<8x64xf32>
    %11 = arith.mulf %10, %9 : vector<8x64xf32>
    %cst_7 = arith.constant 0.707106769 : f32
    %12 = vector.broadcast %cst_7 : f32 to vector<8x64xf32>
    %13 = arith.mulf %9, %12 : vector<8x64xf32>
    %14 = math.erf %13 : vector<8x64xf32>
    %cst_8 = arith.constant 1.000000e+00 : f32
    %15 = vector.broadcast %cst_8 : f32 to vector<8x64xf32>
    %16 = arith.addf %15, %14 : vector<8x64xf32>
    %17 = arith.mulf %11, %16 : vector<8x64xf32>
    %18 = arith.truncf %17 : vector<8x64xf32> to vector<8x64xbf16>
    %c0_9 = arith.constant 0 : index
    %c0_10 = arith.constant 0 : index
    %19 = vector.load %arg8[%c0_9, %c0_10] : memref<8x128xf32, #tpu.memory_space<vmem>>, vector<8x128xf32>
    %c0_11 = arith.constant 0 : index
    %c0_12 = arith.constant 0 : index
    %20 = vector.load %arg5[%c0_11, %c0_12] : memref<64x128xbf16, #tpu.memory_space<vmem>>, vector<64x128xbf16>
    %cst_13 = arith.constant dense<0.000000e+00> : vector<8x128xf32>
    %21 = tpu.matmul %18, %20, %cst_13 {dimension_numbers = #tpu.dot_dimension_numbers<[1], [0], [0], [1], [0, 0, 1, 1], [], []>} : vector<8x64xbf16>, vector<64x128xbf16>, vector<8x128xf32> -> vector<8x128xf32>
    %22 = arith.addf %19, %21 : vector<8x128xf32>
    %c0_14 = arith.constant 0 : index
    %c0_15 = arith.constant 0 : index
    %23 = vector.load %arg8[%c0_14, %c0_15] : memref<8x128xf32, #tpu.memory_space<vmem>>, vector<8x128xf32>
    tpu.vector_store %arg8[%c0_14, %c0_15], %22 {strides = array<i32>} : memref<8x128xf32, #tpu.memory_space<vmem>>, vector<8x128xf32>,
    %c0_i32_16 = arith.constant 0 : i32
    %24 = arith.cmpi eq, %arg1, %c0_i32_16 : i32
    %25 = arith.extui %24 : i1 to i32
    %c0_i32_17 = arith.constant 0 : i32
    %26 = arith.cmpi ne, %25, %c0_i32_17 : i32
    scf.if %26 {
      %c0_18 = arith.constant 0 : index
      %c0_19 = arith.constant 0 : index
      %27 = vector.load %arg8[%c0_18, %c0_19] : memref<8x128xf32, #tpu.memory_space<vmem>>, vector<8x128xf32>
      %c0_20 = arith.constant 0 : index
      %c0_21 = arith.constant 0 : index
      %28 = vector.load %arg6[%c0_20, %c0_21] : memref<1x128xf32, #tpu.memory_space<vmem>>, vector<1x128xf32>
      %29 = vector.broadcast %28 : vector<1x128xf32> to vector<8x128xf32>
      %30 = arith.addf %27, %29 : vector<8x128xf32>
      %c0_22 = arith.constant 0 : index
      %c0_23 = arith.constant 0 : index
      %31 = vector.load %arg7[%c0_22, %c0_23] : memref<8x128xf32, #tpu.memory_space<vmem>>, vector<8x128xf32>
      tpu.vector_store %arg7[%c0_22, %c0_23], %30 {strides = array<i32>} : memref<8x128xf32, #tpu.memory_space<vmem>>, vector<8x128xf32>,
    } else {
    }
    return
  }
  func.func @transform_0(%arg0: i32, %arg1: i32) -> (i32, i32) {
    %c0_i32 = arith.constant 0 : i32
    %c0_i32_0 = arith.constant 0 : i32
    return %arg0, %c0_i32 : i32, i32
  }
  func.func @transform_1(%arg0: i32, %arg1: i32) -> (i32, i32) {
    %c0_i32 = arith.constant 0 : i32
    %c0_i32_0 = arith.constant 0 : i32
    return %c0_i32, %arg1 : i32, i32
  }
  func.func @transform_2(%arg0: i32, %arg1: i32) -> (i32, i32) {
    %c0_i32 = arith.constant 0 : i32
    %c0_i32_0 = arith.constant 0 : i32
    return %c0_i32, %arg1 : i32, i32
  }
  func.func @transform_3(%arg0: i32, %arg1: i32) -> (i32, i32) {
    %c0_i32 = arith.constant 0 : i32
    %c0_i32_0 = arith.constant 0 : i32
    return %arg1, %c0_i32 : i32, i32
  }
  func.func @transform_4(%arg0: i32, %arg1: i32) -> (i32, i32) {
    %c0_i32 = arith.constant 0 : i32
    %c0_i32_0 = arith.constant 0 : i32
    %c0_i32_1 = arith.constant 0 : i32
    return %c0_i32, %c0_i32_0 : i32, i32
  }
  func.func @transform_5(%arg0: i32, %arg1: i32) -> (i32, i32) {
    %c0_i32 = arith.constant 0 : i32
    %c0_i32_0 = arith.constant 0 : i32
    return %arg0, %c0_i32 : i32, i32
  }
}

</mosaic_0001>

<llo_original>
// kernel: tpu_custom_call.1
$region0: #{tpu_custom_call.1}
  #allocation0 [shape = 'u32[]', space=smem, size = 0x4, offset = 0x4, fixed_abs, tag = 'smem constant byte address 0x4 - core index']
  #allocation1 [shape = 'u32[144,128]{1,0:T(1,128)}', space=vmem, size = 0x12000, scoped, tag = 'internal scratch']
  #allocation2 [shape = 'f32[8,128]{1,0:T(8,128)}', space=vmem, size = 0x1000, scoped, tag = 'scratch operand']
  %s0 = inlined_call_operand.hbm [shape: f32[16,32], index: 0, kind: input, shape index: {}]
  %s1 = inlined_call_operand.hbm [shape: bf16[32,64], index: 1, kind: input, shape index: {}]
  %s2 = inlined_call_operand.vmem [shape: f32[1,64], index: 2, kind: input, shape index: {}]
  %s3 = inlined_call_operand.hbm [shape: bf16[64,128], index: 3, kind: input, shape index: {}]
  %s4 = inlined_call_operand.vmem [shape: f32[1,128], index: 4, kind: input, shape index: {}]
  %s5 = inlined_call_operand.hbm [shape: f32[16,128], index: 5, kind: output, shape index: {}]
  %s6 = sld [smem:[#allocation0]]
  $region73: #{tpu_custom_call.1} parent=0
    _
  %s8 = ssub.s32 1, %s6
  %s9 = scalar_select 0, %s8, %s6
  $region1: #{tpu_custom_call.1} parent=0
    #allocation3 [shape = 'u8[8192]{0}', space=vmem, size = 0x2000, scoped, tag = 'input window, operand 0']
    #allocation4 [shape = 's32[2]{0}', space=sflag, size = 0x8, scoped, tag = 'scoped memory for tpu_custom_call.1']
    #allocation5 [shape = 's32[2]{0}', space=sflag, size = 0x8, scoped, tag = 'scoped memory for tpu_custom_call.1']
    #allocation6 [shape = 'u8[8192]{0}', space=vmem, size = 0x2000, scoped, tag = 'input window, operand 1, single buffered']
    #allocation7 [shape = 's32[1]{0}', space=sflag, size = 0x4, scoped, tag = 'scoped memory for tpu_custom_call.1']
    #allocation8 [shape = 'u8[16384]{0}', space=vmem, size = 0x4000, scoped, tag = 'input window, operand 3, single buffered']
    #allocation9 [shape = 'u8[8192]{0}', space=vmem, size = 0x2000, scoped, tag = 'output window, operand 0']
    %10 = vsyncpa [#allocation4], 0
    %s11 = scalar_lea.sflag [#allocation4], 1
    %12 = vsyncpa %s11, 0
    %13 = vsyncpa [#allocation7], 0
    %14 = vsyncpa [#allocation5], 0
    %s15 = scalar_lea.sflag [#allocation5], 1
    %16 = vsyncpa %s15, 0
    loop: start=0, step=1, limit=4
    $region2: #{tpu_custom_call.1} parent=1 // loop_pre_header
      _
    $region3: #{tpu_custom_call.1} parent=1 // loop_header
      %s18 = sphi 0, %s22
      %p19 = scmp.ge.s32.totalorder %s18, 4
      %s25 = sphi 0, %s37
      %s26 = sphi 0, %s33
      %s27 = sphi 0, %s25
      %s28 = sphi 0, %s26
      %s29 = sphi 0, %s27
      %s30 = sphi 0, %s28
      %s40 = sphi 0, %s42
      %s43 = sphi 0, %s40
      %s44 = sphi 0, %s43
      %s60 = sphi 0, %s44
      %s66 = sphi 0, %s68
      %s69 = sphi 0, %s66
      %s70 = sphi 0, %s69
      %s86 = sphi 0, %s70
      %s92 = sphi 0, %s94
      %s95 = sphi 0, %s92
      %s96 = sphi 0, %s95
      %s112 = sphi 0, %s96
      %s118 = sphi 0, %s120
      %s121 = sphi 0, %s118
      %s122 = sphi 0, %s121
      %s138 = sphi 0, %s122
      %s142 = sphi 0, %s142
      %s144 = sphi 0, %s142
      %s145 = sphi 0, %s144
      %s159 = sphi 0, %s145
      %s165 = sphi 0, %s167
      %s168 = sphi 0, %s165
      %s169 = sphi 0, %s168
      %s185 = sphi 0, %s169
    $region4: #{tpu_custom_call.1} parent=1 // loop_header_branch
      %21 = sbr.rel (%p19) target = $region8
    $region5: #{tpu_custom_call.1} parent=1 // loop_body
      %s23 = ssub.s32 %s18, 1
      %s24 = ssub.s32 %s18, 2
      %s31 = sadd.s32 1, %s26
      %p32 = scmp.ge.s32.totalorder %s31, 1
      %s33 = scalar_select %p32, 0, %s31
      %s34 = sadd.s32 1, %s25
      %s35 = scalar_select %p32, %s34, %s25
      %p36 = scmp.ge.s32.totalorder %s35, 2
      %s37 = scalar_select %p36, 0, %s35
      %s38 = ssub.s32 %s25, %s37
      %p39 = scmp.eq.s32.totalorder %s38, 0
      %s41 = sadd.s32 %s40, 1
      %s42 = scalar_select %p39, %s40, %s41
      %p45 = pneg %p39
      %p46 = scmp.eq.s32.totalorder %s18, 1
      %p47 = por %p45, %p46
      %p48 = scmp.ne.s32.totalorder %s40, %s43
      %p49 = scmp.eq.s32.totalorder %s18, 0
      %p50 = por %p48, %p49
      %p51 = scmp.ne.s32.totalorder %s40, %s43
      %p52 = scmp.eq.s32.totalorder %s23, 1
      %p53 = por %p51, %p52
      %p54 = scmp.ne.s32.totalorder %s43, %s44
      %p55 = scmp.eq.s32.totalorder %s23, 0
      %p56 = por %p54, %p55
      %p57 = scmp.ne.s32.totalorder %s43, %s44
      %p58 = scmp.eq.s32.totalorder %s24, 1
      %p59 = por %p57, %p58
      %p61 = scmp.ne.s32.totalorder %s44, %s60
      %p62 = scmp.eq.s32.totalorder %s24, 0
      %p63 = por %p61, %p62
      %s64 = ssub.s32 %s26, %s33
      %p65 = scmp.eq.s32.totalorder %s64, 0
      %s67 = sadd.s32 %s66, 1
      %s68 = scalar_select %p65, %s66, %s67
      %p71 = pneg %p65
      %p72 = scmp.eq.s32.totalorder %s18, 1
      %p73 = por %p71, %p72
      %p74 = scmp.ne.s32.totalorder %s66, %s69
      %p75 = scmp.eq.s32.totalorder %s18, 0
      %p76 = por %p74, %p75
      %p77 = scmp.ne.s32.totalorder %s66, %s69
      %p78 = scmp.eq.s32.totalorder %s23, 1
      %p79 = por %p77, %p78
      %p80 = scmp.ne.s32.totalorder %s69, %s70
      %p81 = scmp.eq.s32.totalorder %s23, 0
      %p82 = por %p80, %p81
      %p83 = scmp.ne.s32.totalorder %s69, %s70
      %p84 = scmp.eq.s32.totalorder %s24, 1
      %p85 = por %p83, %p84
      %p87 = scmp.ne.s32.totalorder %s70, %s86
      %p88 = scmp.eq.s32.totalorder %s24, 0
      %p89 = por %p87, %p88
      %s90 = ssub.s32 %s26, %s33
      %p91 = scmp.eq.s32.totalorder %s90, 0
      %s93 = sadd.s32 %s92, 1
      %s94 = scalar_select %p91, %s92, %s93
      %p97 = pneg %p91
      %p98 = scmp.eq.s32.totalorder %s18, 1
      %p99 = por %p97, %p98
      %p100 = scmp.ne.s32.totalorder %s92, %s95
      %p101 = scmp.eq.s32.totalorder %s18, 0
      %p102 = por %p100, %p101
      %p103 = scmp.ne.s32.totalorder %s92, %s95
      %p104 = scmp.eq.s32.totalorder %s23, 1
      %p105 = por %p103, %p104
      %p106 = scmp.ne.s32.totalorder %s95, %s96
      %p107 = scmp.eq.s32.totalorder %s23, 0
      %p108 = por %p106, %p107
      %p109 = scmp.ne.s32.totalorder %s95, %s96
      %p110 = scmp.eq.s32.totalorder %s24, 1
      %p111 = por %p109, %p110
      %p113 = scmp.ne.s32.totalorder %s96, %s112
      %p114 = scmp.eq.s32.totalorder %s24, 0
      %p115 = por %p113, %p114
      %s116 = ssub.s32 %s26, %s33
      %p117 = scmp.eq.s32.totalorder %s116, 0
      %s119 = sadd.s32 %s118, 1
      %s120 = scalar_select %p117, %s118, %s119
      %p123 = pneg %p117
      %p124 = scmp.eq.s32.totalorder %s18, 1
      %p125 = por %p123, %p124
      %p126 = scmp.ne.s32.totalorder %s118, %s121
      %p127 = scmp.eq.s32.totalorder %s18, 0
      %p128 = por %p126, %p127
      %p129 = scmp.ne.s32.totalorder %s118, %s121
      %p130 = scmp.eq.s32.totalorder %s23, 1
      %p131 = por %p129, %p130
      %p132 = scmp.ne.s32.totalorder %s121, %s122
      %p133 = scmp.eq.s32.totalorder %s23, 0
      %p134 = por %p132, %p133
      %p135 = scmp.ne.s32.totalorder %s121, %s122
      %p136 = scmp.eq.s32.totalorder %s24, 1
      %p137 = por %p135, %p136
      %p139 = scmp.ne.s32.totalorder %s122, %s138
      %p140 = scmp.eq.s32.totalorder %s24, 0
      %p141 = por %p139, %p140
      %s143 = sadd.s32 %s142, 1
      %p146 = scmp.eq.s32.totalorder %s18, 1
      %p147 = scmp.ne.s32.totalorder %s142, %s144
      %p148 = scmp.eq.s32.totalorder %s18, 0
      %p149 = por %p147, %p148
      %p150 = scmp.ne.s32.totalorder %s142, %s144
      %p151 = scmp.eq.s32.totalorder %s23, 1
      %p152 = por %p150, %p151
      %p153 = scmp.ne.s32.totalorder %s144, %s145
      %p154 = scmp.eq.s32.totalorder %s23, 0
      %p155 = por %p153, %p154
      %p156 = scmp.ne.s32.totalorder %s144, %s145
      %p157 = scmp.eq.s32.totalorder %s24, 1
      %p158 = por %p156, %p157
      %p160 = scmp.ne.s32.totalorder %s145, %s159
      %p161 = scmp.eq.s32.totalorder %s24, 0
      %p162 = por %p160, %p161
      %s163 = ssub.s32 %s25, %s37
      %p164 = scmp.eq.s32.totalorder %s163, 0
      %s166 = sadd.s32 %s165, 1
      %s167 = scalar_select %p164, %s165, %s166
      %p170 = pneg %p164
      %p171 = scmp.eq.s32.totalorder %s18, 1
      %p172 = por %p170, %p171
      %p173 = scmp.ne.s32.totalorder %s165, %s168
      %p174 = scmp.eq.s32.totalorder %s18, 0
      %p175 = por %p173, %p174
      %p176 = scmp.ne.s32.totalorder %s165, %s168
      %p177 = scmp.eq.s32.totalorder %s23, 1
      %p178 = por %p176, %p177
      %p179 = scmp.ne.s32.totalorder %s168, %s169
      %p180 = scmp.eq.s32.totalorder %s23, 0
      %p181 = por %p179, %p180
      %p182 = scmp.ne.s32.totalorder %s168, %s169
      %p183 = scmp.eq.s32.totalorder %s24, 1
      %p184 = por %p182, %p183
      %p186 = scmp.ne.s32.totalorder %s169, %s185
      %p187 = scmp.eq.s32.totalorder %s24, 0
      %p188 = por %p186, %p187
      %p189 = scmp.le.s32.totalorder 1, %s18
      %p190 = scmp.lt.s32.totalorder %s18, 3
      %p191 = pnand %p189, %p190
      %p192 = pneg %p191
      // Predicated region
      $region9: #{tpu_custom_call.1} parent=5 // pred_check
        _
      $region10: #{tpu_custom_call.1} parent=5 // pred_check_branch
        %194 = sbr.rel (%p191) target = $region12
      $region11: #{tpu_custom_call.1} parent=5 // pred_region
        %s195 = ssub.s32 %s18, 1
        // Predicated region
        $region13: #{tpu_custom_call.1} parent=11 // pred_check
          %p196 = pneg %p82
        $region14: #{tpu_custom_call.1} parent=11 // pred_check_branch
          %198 = sbr.rel (%p196) target = $region16
        $region15: #{tpu_custom_call.1} parent=11 // pred_region
          %s200 = ssub.s32 256, 256
          %201 = vsyncadd [#allocation7], %s200
          %s202 = smul.addr %s28, 64
          %s203 = scalar_lea.hbm %s1, %s202
          %s204 = sshll.u32 [#allocation6], 4
          %s205 = int_to_ptr.vmem [resolvable:$true] %s204
          %210 = dma.hbm_to_vmem [thread:$0]  %s203, 256, %s205, [#allocation7], 64, 64, 4
        $region16: #{tpu_custom_call.1} parent=11 // pred_fallthru
          _
        // Predicated region
        $region17: #{tpu_custom_call.1} parent=11 // pred_check
          %p211 = pneg %p108
        $region18: #{tpu_custom_call.1} parent=11 // pred_check_branch
          %213 = sbr.rel (%p211) target = $region20
        $region19: #{tpu_custom_call.1} parent=11 // pred_region
          %p214 = scmp.lt.s32.totalorder %s28, 0
          %s215 = scalar_select %p214, %s28, 0
          %s216 = scalar_lea.vmem %s2, %s215
        $region20: #{tpu_custom_call.1} parent=11 // pred_fallthru
          _
        // Predicated region
        $region21: #{tpu_custom_call.1} parent=11 // pred_check
          %p217 = pneg %p134
        $region22: #{tpu_custom_call.1} parent=11 // pred_check_branch
          %219 = sbr.rel (%p217) target = $region24
        $region23: #{tpu_custom_call.1} parent=11 // pred_region
          %s220 = smul.u32 8, %s28
          %s222 = ssub.s32 512, 512
          %223 = vsyncadd [#allocation7], %s222
          %s224 = smul.addr %s220, 64
          %s225 = scalar_lea.hbm %s3, %s224
          %s226 = sshll.u32 [#allocation8], 4
          %s227 = int_to_ptr.vmem [resolvable:$true] %s226
          %232 = dma.hbm_to_vmem [thread:$0]  %s225, 512, %s227, [#allocation7], 64, 64, 4
        $region24: #{tpu_custom_call.1} parent=11 // pred_fallthru
          _
        // Predicated region
        $region25: #{tpu_custom_call.1} parent=11 // pred_check
          %p233 = pneg %p155
        $region26: #{tpu_custom_call.1} parent=11 // pred_check_branch
          %235 = sbr.rel (%p233) target = $region28
        $region27: #{tpu_custom_call.1} parent=11 // pred_region
          _
        $region28: #{tpu_custom_call.1} parent=11 // pred_fallthru
          _
      $region12: #{tpu_custom_call.1} parent=5 // pred_fallthru
        _
      %p236 = scmp.lt.s32.totalorder %s18, 2
      // Predicated region
      $region29: #{tpu_custom_call.1} parent=5 // pred_check
        %p237 = pneg %p236
      $region30: #{tpu_custom_call.1} parent=5 // pred_check_branch
        %239 = sbr.rel (%p237) target = $region32
      $region31: #{tpu_custom_call.1} parent=5 // pred_region
        // Predicated region
        $region33: #{tpu_custom_call.1} parent=31 // pred_check
          %p240 = pneg %p50
        $region34: #{tpu_custom_call.1} parent=31 // pred_check_branch
          %242 = sbr.rel (%p240) target = $region36
        $region35: #{tpu_custom_call.1} parent=31 // pred_region
          %s243 = sand.u32 %s40, 1
          %s244 = scalar_lea.sflag [#allocation4], %s243
          %s245 = sand.u32 %s40, 1
          %s246 = smul.addr %s245, 8
          %s247 = scalar_lea.vmem [#allocation3], %s246
          %s249 = ssub.s32 128, 128
          %250 = vsyncadd %s244, %s249
          %s251 = smul.addr %s25, 128
          %s252 = scalar_lea.hbm %s0, %s251
          %s254 = sshll.u32 %s247, 4
          %s255 = int_to_ptr.vmem [resolvable:$true] %s254
          %257 = dma.hbm_to_vmem [thread:$0]  %s252, 128, %s255, %s244
        $region36: #{tpu_custom_call.1} parent=31 // pred_fallthru
          _
      $region32: #{tpu_custom_call.1} parent=5 // pred_fallthru
        _
      %p258 = scmp.le.s32.totalorder 1, %s18
      %p259 = scmp.lt.s32.totalorder %s18, 3
      %p260 = pnand %p258, %p259
      %p261 = pneg %p260
      // Predicated region
      $region37: #{tpu_custom_call.1} parent=5 // pred_check
        _
      $region38: #{tpu_custom_call.1} parent=5 // pred_check_branch
        %263 = sbr.rel (%p260) target = $region40
      $region39: #{tpu_custom_call.1} parent=5 // pred_region
        %s264 = ssub.s32 %s18, 1
        %s265 = sand.u32 %s43, 1
        %s266 = scalar_lea.sflag [#allocation4], %s265
        %s267 = sand.u32 %s43, 1
        %s268 = smul.addr %s267, 8
        %s269 = scalar_lea.vmem [#allocation3], %s268
        // Predicated region
        $region41: #{tpu_custom_call.1} parent=39 // pred_check
          %p270 = pneg %p56
        $region42: #{tpu_custom_call.1} parent=39 // pred_check_branch
          %272 = sbr.rel (%p270) target = $region44
        $region43: #{tpu_custom_call.1} parent=39 // pred_region
          %273 = dma.done %s266, 128
        $region44: #{tpu_custom_call.1} parent=39 // pred_fallthru
          _
        // Predicated region
        $region45: #{tpu_custom_call.1} parent=39 // pred_check
          %p274 = pneg %p82
        $region46: #{tpu_custom_call.1} parent=39 // pred_check_branch
          %276 = sbr.rel (%p274) target = $region48
        $region47: #{tpu_custom_call.1} parent=39 // pred_region
          %277 = dma.done [#allocation7], 256
        $region48: #{tpu_custom_call.1} parent=39 // pred_fallthru
          _
        // Predicated region
        $region49: #{tpu_custom_call.1} parent=39 // pred_check
          %p278 = pneg %p134
        $region50: #{tpu_custom_call.1} parent=39 // pred_check_branch
          %280 = sbr.rel (%p278) target = $region52
        $region51: #{tpu_custom_call.1} parent=39 // pred_region
          %281 = dma.done [#allocation7], 512
        $region52: #{tpu_custom_call.1} parent=39 // pred_fallthru
          _
        %s282 = sand.u32 %s43, 1
        %s283 = scalar_lea.sflag [#allocation4], %s282
        %s284 = sand.u32 %s43, 1
        %s285 = smul.addr %s284, 8
        %s286 = scalar_lea.vmem [#allocation3], %s285
        %p287 = pneg %p56
        %p288 = pneg %p53
        %p289 = pneg %p82
        %p290 = pneg %p79
        %p291 = scmp.lt.s32.totalorder %s28, 0
        %s292 = scalar_select %p291, %s28, 0
        %s293 = scalar_lea.vmem %s2, %s292
        %p294 = pneg %p108
        %p295 = pneg %p105
        %p296 = pneg %p134
        %p297 = pneg %p131
        %p298 = pneg %p155
        %p299 = pneg %p152
        %p300 = pneg %p181
        %p301 = pneg %p178
        %s302 = sand.u32 %s168, 1
        %s303 = scalar_lea.sflag [#allocation5], %s302
        %s304 = sand.u32 %s168, 1
        %s305 = smul.addr %s304, 8
        %s306 = scalar_lea.vmem [#allocation9], %s305
        %p307 = scmp.lt.s32.totalorder %s28, 0
        %s308 = scalar_select %p307, %s28, 0
        %s309 = scalar_lea.vmem %s2, %s308
        %s310 = smul.u32 8, %s28
        %p312 = scmp.eq.s32.totalorder %s28, 0
        // Predicated region
        $region53: #{tpu_custom_call.1} parent=39 // pred_check
          %p313 = pneg %p312
        $region54: #{tpu_custom_call.1} parent=39 // pred_check_branch
          %315 = sbr.rel (%p313) target = $region56
        $region55: #{tpu_custom_call.1} parent=39 // pred_region
          %316 = vst [vmem:[#allocation2] sm:$0xff] 0.0
        $region56: #{tpu_custom_call.1} parent=39 // pred_fallthru
          _
        %v317 = vld [vmem:[%s269] sm:$0xff]
        %v318 = vpack.c.bf16 %v317, %v317
        %v319 = vld [vmem:[#allocation6] sm:$0xf]
        %v320 = vld [vmem:[#allocation6 + $0x4] sm:$0xf]
        %v321 = vld [vmem:[#allocation6 + $0x8] sm:$0xf]
        %v322 = vld [vmem:[#allocation6 + $0xc] sm:$0xf]
        %v323 = vld [vmem:[%s309] sm:$0x1]
        %v325 = vlaneseq
        %v326 = vshrl.u32 %v325, 7
        %v327 = vsub.s32 0, %v326
        %v328 = vrot.slane %v323, %v327
        %v334 = vunpack.c.l.b16 %v319
        %v335 = vunpack.c.l.b16 %v320
        %v336 = vunpack.c.l.b16 %v321
        %v337 = vunpack.c.l.b16 %v322
        %v338 = vpack.c.b16 %v335, %v334
        %v339 = vpack.c.b16 %v337, %v336
        %vm342 = vcmask 261120
        %v344 = vsel %vm342, %v318, 0
        %346 = vmatprep.subr.bf16.mxu0 0
        %347 = vmatpush1.bf16.msra.mxu0 %v338
        %348 = vmatprep.subr.bf16.mxu0 0
        %349 = vmatpush1.bf16.msra.mxu0 %v339
        %350 = vmatprep.subr.bf16.mxu0 0
        %351 = vmatpush1.bf16.msra.mxu0 0
        %352 = vmatprep.subr.bf16.mxu0 0
        %353 = vmatpush1.bf16.msra.mxu0 0
        %354 = vmatprep.subr.bf16.mxu0 0
        %355 = vmatpush1.bf16.msra.mxu0 0
        %356 = vmatprep.subr.bf16.mxu0 0
        %357 = vmatpush1.bf16.msra.mxu0 0
        %358 = vmatprep.subr.bf16.mxu0 0
        %359 = vmatpush1.bf16.msra.mxu0 0
        %360 = vmatprep.subr.bf16.mxu0 0
        %361 = vmatpush1.bf16.msra.mxu0 0
        %362 = vmatprep.subr.bf16.mxu0 0
        %363 = vmatpush1.bf16.msra.mxu0 0
        %364 = vmatprep.subr.bf16.mxu0 0
        %365 = vmatpush1.bf16.msra.mxu0 0
        %366 = vmatprep.subr.bf16.mxu0 0
        %367 = vmatpush1.bf16.msra.mxu0 0
        %368 = vmatprep.subr.bf16.mxu0 0
        %369 = vmatpush1.bf16.msra.mxu0 0
        %370 = vmatprep.subr.bf16.mxu0 0
        %371 = vmatpush1.bf16.msra.mxu0 0
        %372 = vmatprep.subr.bf16.mxu0 0
        %373 = vmatpush1.bf16.msra.mxu0 0
        %374 = vmatprep.subr.bf16.mxu0 0
        %375 = vmatpush1.bf16.msra.mxu0 0
        %376 = vmatprep.subr.bf16.mxu0 0
        %377 = vmatpush1.bf16.msra.mxu0 0
        %378 = vmatprep.mubr.bf16.mxu0 0
        %379 = vmatmul.mubr.bf16.gmra.mrb[0].mxu0 %v344
        %v380 = vpop.f32.mrb[0].mxu0
        %v381 = vadd.f32 %v328, %v380
        %v382 = vpop.f32.mrb[0].mxu0
        %v383 = vpop.f32.mrb[0].mxu0
        %v384 = vpop.f32.mrb[0].mxu0
        %385 = vdwg.mxu0
        %v386 = vmul.f32 %v381, 0.5
        %v387 = vmul.f32 %v381, 0.70710677
        %v388 = verf.f32.pop %v387
        %v389 = vadd.f32 %v388, 1.0
        %v390 = vmul.f32 %v386, %v389
        %v391 = vpack.c.bf16 %v390, %v390
        %v392 = vld [vmem:[#allocation2] sm:$0xff]
        %v393 = vld [vmem:[#allocation8] sm:$0xf]
        %v394 = vld [vmem:[#allocation8 + $0x4] sm:$0xf]
        %v395 = vld [vmem:[#allocation8 + $0x8] sm:$0xf]
        %v396 = vld [vmem:[#allocation8 + $0xc] sm:$0xf]
        %v397 = vld [vmem:[#allocation8 + $0x10] sm:$0xf]
        %v398 = vld [vmem:[#allocation8 + $0x14] sm:$0xf]
        %v399 = vld [vmem:[#allocation8 + $0x18] sm:$0xf]
        %v400 = vld [vmem:[#allocation8 + $0x1c] sm:$0xf]
        %v409 = vunpack.c.l.b16 %v393
        %v410 = vunpack.c.l.b16 %v394
        %v411 = vunpack.c.l.b16 %v395
        %v412 = vunpack.c.l.b16 %v396
        %v413 = vunpack.c.l.b16 %v397
        %v414 = vunpack.c.l.b16 %v398
        %v415 = vunpack.c.l.b16 %v399
        %v416 = vunpack.c.l.b16 %v400
        %v417 = vpack.c.b16 %v410, %v409
        %v418 = vpack.c.b16 %v412, %v411
        %v419 = vpack.c.b16 %v414, %v413
        %v420 = vpack.c.b16 %v416, %v415
        %vm425 = vcmask 523264
        %v427 = vsel %vm425, %v391, 0
        %429 = vmatprep.subr.bf16.mxu0 0
        %430 = vmatpush1.bf16.msra.mxu0 %v417
        %431 = vmatprep.subr.bf16.mxu0 0
        %432 = vmatpush1.bf16.msra.mxu0 %v418
        %433 = vmatprep.subr.bf16.mxu0 0
        %434 = vmatpush1.bf16.msra.mxu0 %v419
        %435 = vmatprep.subr.bf16.mxu0 0
        %436 = vmatpush1.bf16.msra.mxu0 %v420
        %437 = vmatprep.subr.bf16.mxu0 0
        %438 = vmatpush1.bf16.msra.mxu0 0
        %439 = vmatprep.subr.bf16.mxu0 0
        %440 = vmatpush1.bf16.msra.mxu0 0
        %441 = vmatprep.subr.bf16.mxu0 0
        %442 = vmatpush1.bf16.msra.mxu0 0
        %443 = vmatprep.subr.bf16.mxu0 0
        %444 = vmatpush1.bf16.msra.mxu0 0
        %445 = vmatprep.subr.bf16.mxu0 0
        %446 = vmatpush1.bf16.msra.mxu0 0
        %447 = vmatprep.subr.bf16.mxu0 0
        %448 = vmatpush1.bf16.msra.mxu0 0
        %449 = vmatprep.subr.bf16.mxu0 0
        %450 = vmatpush1.bf16.msra.mxu0 0
        %451 = vmatprep.subr.bf16.mxu0 0
        %452 = vmatpush1.bf16.msra.mxu0 0
        %453 = vmatprep.subr.bf16.mxu0 0
        %454 = vmatpush1.bf16.msra.mxu0 0
        %455 = vmatprep.subr.bf16.mxu0 0
        %456 = vmatpush1.bf16.msra.mxu0 0
        %457 = vmatprep.subr.bf16.mxu0 0
        %458 = vmatpush1.bf16.msra.mxu0 0
        %459 = vmatprep.subr.bf16.mxu0 0
        %460 = vmatpush1.bf16.msra.mxu0 0
        %461 = vmatprep.mubr.bf16.mxu0 0
        %462 = vmatmul.mubr.bf16.gmra.mrb[0].mxu0 %v427
        %v463 = vpop.f32.mrb[0].mxu0
        %v464 = vadd.f32 0.0, %v463
        %v465 = vpop.f32.mrb[0].mxu0
        %v466 = vpop.f32.mrb[0].mxu0
        %v467 = vpop.f32.mrb[0].mxu0
        %468 = vdwg.mxu0
        %v469 = vadd.f32 %v392, %v464
        %470 = vst [vmem:[#allocation2] sm:$0xff] %v469
        // Predicated region
        $region57: #{tpu_custom_call.1} parent=39 // pred_check
          %p471 = pneg %p312
        $region58: #{tpu_custom_call.1} parent=39 // pred_check_branch
          %473 = sbr.rel (%p471) target = $region60
        $region59: #{tpu_custom_call.1} parent=39 // pred_region
          %v474 = vld [vmem:[#allocation2] sm:$0xff]
          %v475 = vld [vmem:[%s4] sm:$0x1]
          %v477 = vlaneseq
          %v478 = vshrl.u32 %v477, 7
          %v479 = vsub.s32 0, %v478
          %v480 = vrot.slane %v475, %v479
          %v482 = vadd.f32 %v474, %v480
          %483 = vst [vmem:[%s306] sm:$0xff] %v482
        $region60: #{tpu_custom_call.1} parent=39 // pred_fallthru
          _
        %s484 = sand.u32 %s168, 1
        %s485 = scalar_lea.sflag [#allocation5], %s484
        %s486 = sand.u32 %s168, 1
        %s487 = smul.addr %s486, 8
        %s488 = scalar_lea.vmem [#allocation9], %s487
        // Predicated region
        $region61: #{tpu_custom_call.1} parent=39 // pred_check
          %p489 = pneg %p178
        $region62: #{tpu_custom_call.1} parent=39 // pred_check_branch
          %491 = sbr.rel (%p489) target = $region64
        $region63: #{tpu_custom_call.1} parent=39 // pred_region
          %s493 = ssub.s32 128, 128
          %494 = vsyncadd %s485, %s493
          %s495 = smul.addr %s27, 128
          %s496 = scalar_lea.hbm %s5, %s495
          %s498 = sshll.u32 %s488, 4
          %s499 = int_to_ptr.vmem [resolvable:$true] %s498
          %501 = dma.vmem_to_hbm [thread:$0]  %s499, 128, %s496, %s485
        $region64: #{tpu_custom_call.1} parent=39 // pred_fallthru
          _
      $region40: #{tpu_custom_call.1} parent=5 // pred_fallthru
        _
      %p502 = scmp.le.s32.totalorder 2, %s18
      // Predicated region
      $region65: #{tpu_custom_call.1} parent=5 // pred_check
        %p503 = pneg %p502
      $region66: #{tpu_custom_call.1} parent=5 // pred_check_branch
        %505 = sbr.rel (%p503) target = $region68
      $region67: #{tpu_custom_call.1} parent=5 // pred_region
        %s506 = ssub.s32 %s18, 2
        // Predicated region
        $region69: #{tpu_custom_call.1} parent=67 // pred_check
          %p507 = pneg %p184
        $region70: #{tpu_custom_call.1} parent=67 // pred_check_branch
          %509 = sbr.rel (%p507) target = $region72
        $region71: #{tpu_custom_call.1} parent=67 // pred_region
          %s510 = sand.u32 %s169, 1
          %s511 = scalar_lea.sflag [#allocation5], %s510
          %s512 = sand.u32 %s169, 1
          %s513 = smul.addr %s512, 8
          %s514 = scalar_lea.vmem [#allocation9], %s513
          %515 = dma.done %s511, 128
        $region72: #{tpu_custom_call.1} parent=67 // pred_fallthru
          _
      $region68: #{tpu_custom_call.1} parent=5 // pred_fallthru
        _
    $region6: #{tpu_custom_call.1} parent=1 // loop_footer
      %s22 = sadd.s32 1, %s18
    $region7: #{tpu_custom_call.1} parent=1 // loop_footer_branch
      %17 = sbr.rel target = $region3
    $region8: #{tpu_custom_call.1} parent=1 // loop_exit
      _
    %516 = vsyncpa [#allocation4], 1
    %s517 = scalar_lea.sflag [#allocation4], 1
    %518 = vsyncpa %s517, 1
    %519 = vsyncpa [#allocation7], 1
    %520 = vsyncpa [#allocation5], 1
    %s521 = scalar_lea.sflag [#allocation5], 1
    %522 = vsyncpa %s521, 1

</llo_original>
